<compile_context>
chip_gen: v6e
topology: v6e:2x2x1
jax: 0.10.0
libtpu: 0.0.40
codegen_flags: <defaults>
</compile_context>

<pallas_src>
import numpy as np
import jax
import jax.numpy as jnp
from jax.experimental import pallas as pl
from jax.experimental.pallas import tpu as pltpu

K_IN = 16            # agent-state rows (input tile sublanes)
H = 32               # fused hidden rows (belief 0..11, attn 16..27, carry 15)
K_OUT = 16           # output rows (0 dec, 1 new bias, 2 new emo, 4..15 attn out)
WB_COLS = 128        # packed weight tile lane width
A_COL, A_W = 0, 16   # tile A column range
B_COL, B_W = 16, 32  # tile B column range
C_COL, C_W = 48, 32  # tile C column range
ATTN_ROW = 16        # attention branch hidden rows 16..27
OUT_ATTN_ROW = 4     # attention output rows 4..15 in the output tile
CARRY = 15           # always-1 carry row / bias column


def social_agent_kernel(agents_ref, wb_ref, out_ref):
    bn = agents_ref.shape[1]
    a = agents_ref[...]                       # (16, bn): attributes x agents

    bias = a[0:1, :]
    si = a[1:2, :]
    emo = a[5:6, :]
    sus = a[6:7, :]
    stub = a[7:8, :]
    cbs = a[8:9, :]
    rnd = a[9:10, :]
    infl = a[10:11, :]

    # --- update_emotional_state(social_influence), no neighbors / no crisis ---
    delta = jnp.abs(bias - si)
    emo_new = jnp.clip(emo - 0.1 * delta + 0.05 * rnd, 0.0, 1.0)
    eff_sus = sus * (1.0 + 0.5 * emo_new)
    conf = jnp.clip(1.0 - delta * cbs, 0.1, 1.0)
    # single-entry history: weighted_history == social_influence (pre-packed in row 4)

    # --- build x^T (16, bn): rows [bias, si*conf, ni, ei, w_hist], row 15 = 1.0 carry ---
    srow_in = jax.lax.broadcasted_iota(jnp.int32, (K_IN, bn), 0)
    scale = jnp.where(srow_in == 1, conf, 1.0)                       # confirmation factor
    scale = jnp.where((srow_in >= 5) & (srow_in < CARRY), 0.0, scale)  # zero aux rows, keep carry
    x = a * scale

    # --- fused weight tiles (resident in VMEM, constant block index) ---
    wa = wb_ref[:, A_COL:A_COL + A_W]          # (32, 16)
    wbm = wb_ref[:, B_COL:B_COL + B_W]         # (32, 32)
    wc = wb_ref[0:K_OUT, C_COL:C_COL + C_W]    # (16, 32)

    srow_h = jax.lax.broadcasted_iota(jnp.int32, (H, bn), 0)
    belief_rows = srow_h < 12                  # ReLU only on the belief branch rows

    y1 = jnp.dot(wa, x, preferred_element_type=jnp.float32)          # (32, bn)
    h1 = jnp.where(belief_rows, jnp.maximum(y1, 0.0), y1)
    y2 = jnp.dot(wbm, h1, preferred_element_type=jnp.float32)        # (32, bn)
    h2 = jnp.where(belief_rows, jnp.maximum(y2, 0.0), y2)
    y3 = jnp.dot(wc, h2, preferred_element_type=jnp.float32)         # (16, bn)

    dec = jnp.tanh(y3[0:1, :])                 # belief network output (Tanh)

    # --- in-place bias update, gated off for influencers ---
    bias_new = bias + (1.0 - infl) * (dec - bias) * eff_sus * (1.0 - stub)

    # --- packed output tile: rows 0..2 scalars, rows 4..15 attention output ---
    srow_out = jax.lax.broadcasted_iota(jnp.int32, (K_OUT, bn), 0)
    out = jnp.where(srow_out >= OUT_ATTN_ROW, y3, 0.0)
    out = jnp.where(srow_out == 0, dec, out)
    out = jnp.where(srow_out == 1, bias_new, out)
    out = jnp.where(srow_out == 2, emo_new, out)
    out_ref[...] = out


def _round_up(x, m):
    return ((x + m - 1) // m) * m


def _pick_block_n(n):
    # Big blocks amortize the ~0.35us/step overhead; keep >= 2 grid steps when
    # possible so v7x's two TensorCores both get work on the parallel axis.
    half = 128 * pl.cdiv(n, 2 * 128)
    return int(min(1024, max(128, half)))


def run_social_agents(agents_t, wb, *, block_n=None):
    """agents_t: (16, N) f32 attribute-major agent state; wb: (32, 128) packed weights."""
    k_in, n = agents_t.shape
    assert k_in == K_IN
    if block_n is None:
        block_n = _pick_block_n(n)
    n_pad = _round_up(n, block_n)
    if n_pad != n:
        agents_t = jnp.pad(agents_t, ((0, 0), (0, n_pad - n)))   # zero tail columns are harmless
    grid = (n_pad // block_n,)
    out = pl.pallas_call(
        social_agent_kernel,
        out_shape=jax.ShapeDtypeStruct((K_OUT, n_pad), jnp.float32),
        grid_spec=pltpu.PrefetchScalarGridSpec(
            num_scalar_prefetch=0,
            grid=grid,
            in_specs=[
                pl.BlockSpec((K_IN, block_n), lambda i: (0, i)),
                # constant block index -> the 16 KB weight tile is DMA'd once and
                # stays resident in VMEM across the grid (double-buffer cost is
                # negligible at this size, so no pipeline_mode override needed).
                pl.BlockSpec((H, WB_COLS), lambda i: (0, 0)),
            ],
            out_specs=pl.BlockSpec((K_OUT, block_n), lambda i: (0, i)),
        ),
        compiler_params=pltpu.CompilerParams(
            dimension_semantics=("parallel",)),
    )(agents_t, wb)
    return out[:, :n]


def _xavier(key, fan_in, fan_out):
    std = np.sqrt(2.0 / (fan_in + fan_out))
    return np.asarray(jax.random.normal(key, (fan_in, fan_out), jnp.float32)) * np.float32(std)


def pack_params(W1, b1, W2, b2, W3, b3, Wp, bp, Wv, bv, Wo, bo):
    """Pack all layer weights (stored (in,out)) + biases into one (32, 128) f32 tile.

    Branch separation depends on the zero padding below (hidden rows 12..14 /
    28..31 and all unused columns stay zero); keep that invariant when repacking.
    """
    wb = np.zeros((H, WB_COLS), np.float32)
    # tile A: x(16) -> h(32); biases folded into column 15 via the carry row.
    wb[0:12, A_COL:A_COL + 5] = W1.T
    wb[ATTN_ROW:ATTN_ROW + 12, A_COL:A_COL + 5] = Wp.T
    wb[0:12, A_COL + CARRY] = b1
    wb[ATTN_ROW:ATTN_ROW + 12, A_COL + CARRY] = bp
    wb[CARRY, A_COL + CARRY] = 1.0                       # propagate carry to h1
    # tile B: h(32) -> h(32); block-diagonal W2^T (belief) / Wv^T (attn value proj).
    wb[0:12, B_COL:B_COL + 12] = W2.T
    wb[ATTN_ROW:ATTN_ROW + 12, B_COL + ATTN_ROW:B_COL + ATTN_ROW + 12] = Wv.T
    wb[0:12, B_COL + CARRY] = b2
    wb[ATTN_ROW:ATTN_ROW + 12, B_COL + CARRY] = bv
    wb[CARRY, B_COL + CARRY] = 1.0                       # propagate carry to h2
    # tile C: h(32) -> out(16); belief scalar on row 0, attn out proj on rows 4..15.
    wb[0:1, C_COL:C_COL + 12] = W3.T
    wb[OUT_ATTN_ROW:OUT_ATTN_ROW + 12, C_COL + ATTN_ROW:C_COL + ATTN_ROW + 12] = Wo.T
    wb[0, C_COL + CARRY] = b3[0]
    wb[OUT_ATTN_ROW:OUT_ATTN_ROW + 12, C_COL + CARRY] = bo
    return jnp.asarray(wb)


if __name__ == "__main__":
    key = jax.random.PRNGKey(0)
    ks = jax.random.split(key, 16)

    # --- deterministic parameter init (shapes from __init__), (in, out) layout ---
    W1, b1 = _xavier(ks[0], 5, 12), np.zeros(12, np.float32)     # belief_network[0]
    W2, b2 = _xavier(ks[1], 12, 12), np.zeros(12, np.float32)    # belief_network[2]
    W3, b3 = _xavier(ks[2], 12, 1), np.zeros(1, np.float32)      # belief_network[4]
    Wp = _xavier(ks[3], 5, 12)                                   # projection (5 -> 12)
    bp = np.asarray(jax.random.uniform(ks[4], (12,), jnp.float32, -0.4, 0.4))
    Wv, bv = _xavier(ks[5], 12, 12), np.zeros(12, np.float32)    # MHA value slice of in_proj
    Wo, bo = _xavier(ks[6], 12, 12), np.zeros(12, np.float32)    # MHA out_proj

    wb = pack_params(W1, b1, W2, b2, W3, b3, Wp, bp, Wv, bv, Wo, bo)

    # --- agent attributes (one SocialAgent) ---
    initial_bias = 0.2
    susceptibility = 0.7
    stubbornness = 0.3
    confirmation_bias_strength = 0.5
    is_influencer = 0.0
    emotional_state = float(jax.random.uniform(ks[7], ()))       # torch.rand(1)

    # --- N independent forward() evaluations, batched along lanes ---
    N = 512
    si = np.asarray(jax.random.uniform(ks[8], (N,), jnp.float32, -1.0, 1.0))
    ni = np.asarray(jax.random.uniform(ks[9], (N,), jnp.float32, -1.0, 1.0))
    ei = np.asarray(jax.random.uniform(ks[10], (N,), jnp.float32, -1.0, 1.0))
    rnd = np.asarray(jax.random.uniform(ks[11], (N,), jnp.float32))  # torch.rand(1) per call

    agents = np.zeros((K_IN, N), np.float32)
    agents[0] = initial_bias
    agents[1] = si
    agents[2] = ni
    agents[3] = ei
    agents[4] = si                     # single-entry weighted history == social_influence
    agents[5] = emotional_state
    agents[6] = susceptibility
    agents[7] = stubbornness
    agents[8] = confirmation_bias_strength
    agents[9] = rnd
    agents[10] = is_influencer
    agents[CARRY] = 1.0                # carry row for folded biases
    agents = jnp.asarray(agents)

    out = np.asarray(jax.block_until_ready(run_social_agents(agents, wb)))

    decision = out[0]
    new_bias = out[1]
    new_emo = out[2]
    attn_out = out[OUT_ATTN_ROW:OUT_ATTN_ROW + 12].T   # (N, 12)

    # --- pure numpy reference check, per forward() call ---
    for i in range(N):
        delta = abs(initial_bias - si[i])
        emo_ref = float(np.clip(emotional_state - 0.1 * delta + 0.05 * rnd[i], 0.0, 1.0))
        eff_sus = susceptibility * (1.0 + 0.5 * emo_ref)
        conf = float(np.clip(1.0 - delta * confirmation_bias_strength, 0.1, 1.0))
        x = np.array([initial_bias, si[i] * conf, ni[i], ei[i], si[i]], np.float32)
        h1 = np.maximum(x @ W1 + b1, 0.0)
        h2 = np.maximum(h1 @ W2 + b2, 0.0)
        dec_ref = float(np.tanh(h2 @ W3 + b3)[0])
        attn_ref = ((x @ Wp + bp) @ Wv + bv) @ Wo + bo
        bias_ref = initial_bias + (dec_ref - initial_bias) * eff_sus * (1.0 - stubbornness)

        assert abs(float(decision[i]) - dec_ref) < 1e-4, (i, decision[i], dec_ref)
        assert abs(float(new_bias[i]) - bias_ref) < 1e-4, (i, new_bias[i], bias_ref)
        assert abs(float(new_emo[i]) - emo_ref) < 1e-4, (i, new_emo[i], emo_ref)
        assert np.allclose(attn_out[i], attn_ref, atol=1e-4), i

    print("KERNEL_OK")
</pallas_src>

<mosaic_0001>
module attributes {stable_mosaic.version = 11 : i64} {
  func.func @social_agent_kernel(%arg0: i32, %arg1: memref<16x256xf32, #tpu.memory_space<vmem>>, %arg2: memref<32x128xf32, #tpu.memory_space<vmem>>, %arg3: memref<16x256xf32, #tpu.memory_space<vmem>>) attributes {dimension_semantics = [#tpu.dimension_semantics<parallel>], iteration_bounds = array<i64: 2>, scalar_prefetch = 0 : i64, scratch_operands = 0 : i64, tpu.core_type = #tpu.core_type<tc>, window_params = [{transform_indices = @transform_0, window_bounds = array<i64: 16, 256>}, {pipeline_mode = #tpu.pipeline_mode<synchronous>, transform_indices = @transform_1, window_bounds = array<i64: 32, 128>}, {transform_indices = @transform_2, window_bounds = array<i64: 16, 256>}]} {
    %c0 = arith.constant 0 : index
    %c0_0 = arith.constant 0 : index
    %0 = vector.load %arg1[%c0, %c0_0] : memref<16x256xf32, #tpu.memory_space<vmem>>, vector<16x256xf32>
    %1 = vector.extract_strided_slice %0 {offsets = [0, 0], sizes = [1, 256], strides = [1, 1]} : vector<16x256xf32> to vector<1x256xf32>
    %2 = vector.extract_strided_slice %0 {offsets = [1, 0], sizes = [1, 256], strides = [1, 1]} : vector<16x256xf32> to vector<1x256xf32>
    %3 = vector.extract_strided_slice %0 {offsets = [5, 0], sizes = [1, 256], strides = [1, 1]} : vector<16x256xf32> to vector<1x256xf32>
    %4 = vector.extract_strided_slice %0 {offsets = [6, 0], sizes = [1, 256], strides = [1, 1]} : vector<16x256xf32> to vector<1x256xf32>
    %5 = vector.extract_strided_slice %0 {offsets = [7, 0], sizes = [1, 256], strides = [1, 1]} : vector<16x256xf32> to vector<1x256xf32>
    %6 = vector.extract_strided_slice %0 {offsets = [8, 0], sizes = [1, 256], strides = [1, 1]} : vector<16x256xf32> to vector<1x256xf32>
    %7 = vector.extract_strided_slice %0 {offsets = [9, 0], sizes = [1, 256], strides = [1, 1]} : vector<16x256xf32> to vector<1x256xf32>
    %8 = vector.extract_strided_slice %0 {offsets = [10, 0], sizes = [1, 256], strides = [1, 1]} : vector<16x256xf32> to vector<1x256xf32>
    %9 = arith.subf %1, %2 : vector<1x256xf32>
    %10 = math.absf %9 : vector<1x256xf32>
    %cst = arith.constant 1.000000e-01 : f32
    %11 = vector.broadcast %cst : f32 to vector<1x256xf32>
    %12 = arith.mulf %11, %10 : vector<1x256xf32>
    %13 = arith.subf %3, %12 : vector<1x256xf32>
    %cst_1 = arith.constant 5.000000e-02 : f32
    %14 = vector.broadcast %cst_1 : f32 to vector<1x256xf32>
    %15 = arith.mulf %14, %7 : vector<1x256xf32>
    %16 = arith.addf %13, %15 : vector<1x256xf32>
    %cst_2 = arith.constant 0.000000e+00 : f32
    %cst_3 = arith.constant 1.000000e+00 : f32
    %17 = vector.broadcast %cst_2 : f32 to vector<1x256xf32>
    %18 = arith.maximumf %17, %16 : vector<1x256xf32>
    %19 = vector.broadcast %cst_3 : f32 to vector<1x256xf32>
    %20 = arith.minimumf %19, %18 : vector<1x256xf32>
    %cst_4 = arith.constant 5.000000e-01 : f32
    %21 = vector.broadcast %cst_4 : f32 to vector<1x256xf32>
    %22 = arith.mulf %21, %20 : vector<1x256xf32>
    %cst_5 = arith.constant 1.000000e+00 : f32
    %23 = vector.broadcast %cst_5 : f32 to vector<1x256xf32>
    %24 = arith.addf %23, %22 : vector<1x256xf32>
    %25 = arith.mulf %4, %24 : vector<1x256xf32>
    %26 = arith.mulf %10, %6 : vector<1x256xf32>
    %cst_6 = arith.constant 1.000000e+00 : f32
    %27 = vector.broadcast %cst_6 : f32 to vector<1x256xf32>
    %28 = arith.subf %27, %26 : vector<1x256xf32>
    %cst_7 = arith.constant 1.000000e-01 : f32
    %cst_8 = arith.constant 1.000000e+00 : f32
    %29 = vector.broadcast %cst_7 : f32 to vector<1x256xf32>
    %30 = arith.maximumf %29, %28 : vector<1x256xf32>
    %31 = vector.broadcast %cst_8 : f32 to vector<1x256xf32>
    %32 = arith.minimumf %31, %30 : vector<1x256xf32>
    %33 = tpu.iota {dimensions = array<i32: 0>} : vector<16x256xi32>
    %c1_i32 = arith.constant 1 : i32
    %34 = vector.broadcast %c1_i32 : i32 to vector<16x256xi32>
    %35 = arith.cmpi eq, %33, %34 : vector<16x256xi32>
    %cst_9 = arith.constant 1.000000e+00 : f32
    %36 = vector.shape_cast %32 : vector<1x256xf32> to vector<1x256xf32>
    %37 = vector.broadcast %36 : vector<1x256xf32> to vector<16x256xf32>
    %38 = vector.broadcast %cst_9 : f32 to vector<16x256xf32>
    %39 = arith.select %35, %37, %38 : vector<16x256xi1>, vector<16x256xf32>
    %c5_i32 = arith.constant 5 : i32
    %40 = vector.broadcast %c5_i32 : i32 to vector<16x256xi32>
    %41 = arith.cmpi sge, %33, %40 : vector<16x256xi32>
    %c15_i32 = arith.constant 15 : i32
    %42 = vector.broadcast %c15_i32 : i32 to vector<16x256xi32>
    %43 = arith.cmpi slt, %33, %42 : vector<16x256xi32>
    %44 = arith.andi %41, %43 : vector<16x256xi1>
    %cst_10 = arith.constant 0.000000e+00 : f32
    %45 = vector.broadcast %cst_10 : f32 to vector<16x256xf32>
    %46 = arith.select %44, %45, %39 : vector<16x256xi1>, vector<16x256xf32>
    %47 = arith.mulf %0, %46 : vector<16x256xf32>
    %c0_11 = arith.constant 0 : index
    %c0_12 = arith.constant 0 : index
    %48 = vector.load %arg2[%c0_11, %c0_12] : memref<32x128xf32, #tpu.memory_space<vmem>>, vector<32x16xf32>
    %c0_13 = arith.constant 0 : index
    %c16 = arith.constant 16 : index
    %49 = vector.load %arg2[%c0_13, %c16] : memref<32x128xf32, #tpu.memory_space<vmem>>, vector<32x32xf32>
    %c0_14 = arith.constant 0 : index
    %c48 = arith.constant 48 : index
    %50 = vector.load %arg2[%c0_14, %c48] : memref<32x128xf32, #tpu.memory_space<vmem>>, vector<16x32xf32>
    %51 = tpu.iota {dimensions = array<i32: 0>} : vector<32x256xi32>
    %c12_i32 = arith.constant 12 : i32
    %52 = vector.broadcast %c12_i32 : i32 to vector<32x256xi32>
    %53 = arith.cmpi slt, %51, %52 : vector<32x256xi32>
    %cst_15 = arith.constant dense<0.000000e+00> : vector<32x256xf32>
    %54 = tpu.matmul %48, %47, %cst_15 {dimension_numbers = #tpu.dot_dimension_numbers<[1], [0], [0], [1], [0, 0, 1, 1], [], []>} : vector<32x16xf32>, vector<16x256xf32>, vector<32x256xf32> -> vector<32x256xf32>
    %cst_16 = arith.constant 0.000000e+00 : f32
    %55 = vector.broadcast %cst_16 : f32 to vector<32x256xf32>
    %56 = arith.maximumf %54, %55 : vector<32x256xf32>
    %57 = arith.select %53, %56, %54 : vector<32x256xi1>, vector<32x256xf32>
    %cst_17 = arith.constant dense<0.000000e+00> : vector<32x256xf32>
    %58 = tpu.matmul %49, %57, %cst_17 {dimension_numbers = #tpu.dot_dimension_numbers<[1], [0], [0], [1], [0, 0, 1, 1], [], []>} : vector<32x32xf32>, vector<32x256xf32>, vector<32x256xf32> -> vector<32x256xf32>
    %cst_18 = arith.constant 0.000000e+00 : f32
    %59 = vector.broadcast %cst_18 : f32 to vector<32x256xf32>
    %60 = arith.maximumf %58, %59 : vector<32x256xf32>
    %61 = arith.select %53, %60, %58 : vector<32x256xi1>, vector<32x256xf32>
    %cst_19 = arith.constant dense<0.000000e+00> : vector<16x256xf32>
    %62 = tpu.matmul %50, %61, %cst_19 {dimension_numbers = #tpu.dot_dimension_numbers<[1], [0], [0], [1], [0, 0, 1, 1], [], []>} : vector<16x32xf32>, vector<32x256xf32>, vector<16x256xf32> -> vector<16x256xf32>
    %63 = vector.extract_strided_slice %62 {offsets = [0, 0], sizes = [1, 256], strides = [1, 1]} : vector<16x256xf32> to vector<1x256xf32>
    %64 = math.tanh %63 : vector<1x256xf32>
    %cst_20 = arith.constant 1.000000e+00 : f32
    %65 = vector.broadcast %cst_20 : f32 to vector<1x256xf32>
    %66 = arith.subf %65, %8 : vector<1x256xf32>
    %67 = arith.subf %64, %1 : vector<1x256xf32>
    %68 = arith.mulf %66, %67 : vector<1x256xf32>
    %69 = arith.mulf %68, %25 : vector<1x256xf32>
    %cst_21 = arith.constant 1.000000e+00 : f32
    %70 = vector.broadcast %cst_21 : f32 to vector<1x256xf32>
    %71 = arith.subf %70, %5 : vector<1x256xf32>
    %72 = arith.mulf %69, %71 : vector<1x256xf32>
    %73 = arith.addf %1, %72 : vector<1x256xf32>
    %74 = tpu.iota {dimensions = array<i32: 0>} : vector<16x256xi32>
    %c4_i32 = arith.constant 4 : i32
    %75 = vector.broadcast %c4_i32 : i32 to vector<16x256xi32>
    %76 = arith.cmpi sge, %74, %75 : vector<16x256xi32>
    %cst_22 = arith.constant 0.000000e+00 : f32
    %77 = vector.broadcast %cst_22 : f32 to vector<16x256xf32>
    %78 = arith.select %76, %62, %77 : vector<16x256xi1>, vector<16x256xf32>
    %c0_i32 = arith.constant 0 : i32
    %79 = vector.broadcast %c0_i32 : i32 to vector<16x256xi32>
    %80 = arith.cmpi eq, %74, %79 : vector<16x256xi32>
    %81 = vector.shape_cast %64 : vector<1x256xf32> to vector<1x256xf32>
    %82 = vector.broadcast %81 : vector<1x256xf32> to vector<16x256xf32>
    %83 = arith.select %80, %82, %78 : vector<16x256xi1>, vector<16x256xf32>
    %c1_i32_23 = arith.constant 1 : i32
    %84 = vector.broadcast %c1_i32_23 : i32 to vector<16x256xi32>
    %85 = arith.cmpi eq, %74, %84 : vector<16x256xi32>
    %86 = vector.shape_cast %73 : vector<1x256xf32> to vector<1x256xf32>
    %87 = vector.broadcast %86 : vector<1x256xf32> to vector<16x256xf32>
    %88 = arith.select %85, %87, %83 : vector<16x256xi1>, vector<16x256xf32>
    %c2_i32 = arith.constant 2 : i32
    %89 = vector.broadcast %c2_i32 : i32 to vector<16x256xi32>
    %90 = arith.cmpi eq, %74, %89 : vector<16x256xi32>
    %91 = vector.shape_cast %20 : vector<1x256xf32> to vector<1x256xf32>
    %92 = vector.broadcast %91 : vector<1x256xf32> to vector<16x256xf32>
    %93 = arith.select %90, %92, %88 : vector<16x256xi1>, vector<16x256xf32>
    %c0_24 = arith.constant 0 : index
    %c0_25 = arith.constant 0 : index
    %94 = vector.load %arg3[%c0_24, %c0_25] : memref<16x256xf32, #tpu.memory_space<vmem>>, vector<16x256xf32>
    tpu.vector_store %arg3[%c0_24, %c0_25], %93 {strides = array<i32>} : memref<16x256xf32, #tpu.memory_space<vmem>>, vector<16x256xf32>,
    return
  }
  func.func @transform_0(%arg0: i32) -> (i32, i32) {
    %c0_i32 = arith.constant 0 : i32
    %c0_i32_0 = arith.constant 0 : i32
    return %c0_i32, %arg0 : i32, i32
  }
  func.func @transform_1(%arg0: i32) -> (i32, i32) {
    %c0_i32 = arith.constant 0 : i32
    %c0_i32_0 = arith.constant 0 : i32
    %c0_i32_1 = arith.constant 0 : i32
    return %c0_i32, %c0_i32_0 : i32, i32
  }
  func.func @transform_2(%arg0: i32) -> (i32, i32) {
    %c0_i32 = arith.constant 0 : i32
    %c0_i32_0 = arith.constant 0 : i32
    return %c0_i32, %arg0 : i32, i32
  }
}

</mosaic_0001>

<llo_original>
// kernel: tpu_custom_call.1
$region0: #{tpu_custom_call.1}
  #allocation0 [shape = 'u32[]', space=smem, size = 0x4, offset = 0x4, fixed_abs, tag = 'smem constant byte address 0x4 - core index']
  #allocation1 [shape = 'u32[144,128]{1,0:T(1,128)}', space=vmem, size = 0x12000, scoped, tag = 'internal scratch']
  %s0 = inlined_call_operand.hbm [shape: f32[16,512], index: 0, kind: input, shape index: {}]
  %s1 = inlined_call_operand.hbm [shape: f32[32,128], index: 1, kind: input, shape index: {}]
  %s2 = inlined_call_operand.hbm [shape: f32[16,512], index: 2, kind: output, shape index: {}]
  %s3 = sld [smem:[#allocation0]]
  $region49: #{tpu_custom_call.1} parent=0
    _
  %s5 = ssub.s32 1, %s3
  %s6 = scalar_select 0, %s5, %s3
  $region1: #{tpu_custom_call.1} parent=0
    #allocation2 [shape = 'u8[32768]{0}', space=vmem, size = 0x8000, scoped, tag = 'input window, operand 0']
    #allocation3 [shape = 's32[2]{0}', space=sflag, size = 0x8, scoped, tag = 'scoped memory for tpu_custom_call.1']
    #allocation4 [shape = 's32[2]{0}', space=sflag, size = 0x8, scoped, tag = 'scoped memory for tpu_custom_call.1']
    #allocation5 [shape = 'u8[16384]{0}', space=vmem, size = 0x4000, scoped, tag = 'input window, operand 1, single buffered']
    #allocation6 [shape = 's32[1]{0}', space=sflag, size = 0x4, scoped, tag = 'scoped memory for tpu_custom_call.1']
    #allocation7 [shape = 'u8[32768]{0}', space=vmem, size = 0x8000, scoped, tag = 'output window, operand 0']
    %7 = vsyncpa [#allocation3], 0
    %s8 = scalar_lea.sflag [#allocation3], 1
    %9 = vsyncpa %s8, 0
    %10 = vsyncpa [#allocation6], 0
    %11 = vsyncpa [#allocation4], 0
    %s12 = scalar_lea.sflag [#allocation4], 1
    %13 = vsyncpa %s12, 0
    loop: start=0, step=1, limit=4
    $region2: #{tpu_custom_call.1} parent=1 // loop_pre_header
      _
    $region3: #{tpu_custom_call.1} parent=1 // loop_header
      %s15 = sphi 0, %s19
      %p16 = scmp.ge.s32.totalorder %s15, 4
      %s25 = sphi 0, %s27
      %s28 = sphi 0, %s25
      %s29 = sphi 0, %s28
      %s45 = sphi 0, %s29
      %s49 = sphi 0, %s49
      %s51 = sphi 0, %s49
      %s52 = sphi 0, %s51
      %s66 = sphi 0, %s52
      %s72 = sphi 0, %s74
      %s75 = sphi 0, %s72
      %s76 = sphi 0, %s75
      %s92 = sphi 0, %s76
    $region4: #{tpu_custom_call.1} parent=1 // loop_header_branch
      %18 = sbr.rel (%p16) target = $region8
    $region5: #{tpu_custom_call.1} parent=1 // loop_body
      %s20 = ssub.s32 %s15, 1
      %s21 = ssub.s32 %s15, 2
      %s22 = sadd.s32 %s15, 1
      %s23 = ssub.s32 %s15, %s22
      %p24 = scmp.eq.s32.totalorder %s23, 0
      %s26 = sadd.s32 %s25, 1
      %s27 = scalar_select %p24, %s25, %s26
      %p30 = pneg %p24
      %p31 = scmp.eq.s32.totalorder %s15, 1
      %p32 = por %p30, %p31
      %p33 = scmp.ne.s32.totalorder %s25, %s28
      %p34 = scmp.eq.s32.totalorder %s15, 0
      %p35 = por %p33, %p34
      %p36 = scmp.ne.s32.totalorder %s25, %s28
      %p37 = scmp.eq.s32.totalorder %s20, 1
      %p38 = por %p36, %p37
      %p39 = scmp.ne.s32.totalorder %s28, %s29
      %p40 = scmp.eq.s32.totalorder %s20, 0
      %p41 = por %p39, %p40
      %p42 = scmp.ne.s32.totalorder %s28, %s29
      %p43 = scmp.eq.s32.totalorder %s21, 1
      %p44 = por %p42, %p43
      %p46 = scmp.ne.s32.totalorder %s29, %s45
      %p47 = scmp.eq.s32.totalorder %s21, 0
      %p48 = por %p46, %p47
      %s50 = sadd.s32 %s49, 1
      %p53 = scmp.eq.s32.totalorder %s15, 1
      %p54 = scmp.ne.s32.totalorder %s49, %s51
      %p55 = scmp.eq.s32.totalorder %s15, 0
      %p56 = por %p54, %p55
      %p57 = scmp.ne.s32.totalorder %s49, %s51
      %p58 = scmp.eq.s32.totalorder %s20, 1
      %p59 = por %p57, %p58
      %p60 = scmp.ne.s32.totalorder %s51, %s52
      %p61 = scmp.eq.s32.totalorder %s20, 0
      %p62 = por %p60, %p61
      %p63 = scmp.ne.s32.totalorder %s51, %s52
      %p64 = scmp.eq.s32.totalorder %s21, 1
      %p65 = por %p63, %p64
      %p67 = scmp.ne.s32.totalorder %s52, %s66
      %p68 = scmp.eq.s32.totalorder %s21, 0
      %p69 = por %p67, %p68
      %s70 = ssub.s32 %s15, %s22
      %p71 = scmp.eq.s32.totalorder %s70, 0
      %s73 = sadd.s32 %s72, 1
      %s74 = scalar_select %p71, %s72, %s73
      %p77 = pneg %p71
      %p78 = scmp.eq.s32.totalorder %s15, 1
      %p79 = por %p77, %p78
      %p80 = scmp.ne.s32.totalorder %s72, %s75
      %p81 = scmp.eq.s32.totalorder %s15, 0
      %p82 = por %p80, %p81
      %p83 = scmp.ne.s32.totalorder %s72, %s75
      %p84 = scmp.eq.s32.totalorder %s20, 1
      %p85 = por %p83, %p84
      %p86 = scmp.ne.s32.totalorder %s75, %s76
      %p87 = scmp.eq.s32.totalorder %s20, 0
      %p88 = por %p86, %p87
      %p89 = scmp.ne.s32.totalorder %s75, %s76
      %p90 = scmp.eq.s32.totalorder %s21, 1
      %p91 = por %p89, %p90
      %p93 = scmp.ne.s32.totalorder %s76, %s92
      %p94 = scmp.eq.s32.totalorder %s21, 0
      %p95 = por %p93, %p94
      %p96 = scmp.le.s32.totalorder 1, %s15
      %p97 = scmp.lt.s32.totalorder %s15, 3
      %p98 = pnand %p96, %p97
      %p99 = pneg %p98
      // Predicated region
      $region9: #{tpu_custom_call.1} parent=5 // pred_check
        _
      $region10: #{tpu_custom_call.1} parent=5 // pred_check_branch
        %101 = sbr.rel (%p98) target = $region12
      $region11: #{tpu_custom_call.1} parent=5 // pred_region
        %s102 = ssub.s32 %s15, 1
        // Predicated region
        $region13: #{tpu_custom_call.1} parent=11 // pred_check
          %p103 = pneg %p62
        $region14: #{tpu_custom_call.1} parent=11 // pred_check_branch
          %105 = sbr.rel (%p103) target = $region16
        $region15: #{tpu_custom_call.1} parent=11 // pred_region
          %s107 = ssub.s32 512, 512
          %108 = vsyncadd [#allocation6], %s107
          %s109 = sshll.u32 [#allocation5], 4
          %s110 = int_to_ptr.vmem [resolvable:$true] %s109
          %115 = dma.hbm_to_vmem [thread:$0]  %s1, 512, %s110, [#allocation6], 128, 128, 8
        $region16: #{tpu_custom_call.1} parent=11 // pred_fallthru
          _
      $region12: #{tpu_custom_call.1} parent=5 // pred_fallthru
        _
      %p116 = scmp.lt.s32.totalorder %s15, 2
      // Predicated region
      $region17: #{tpu_custom_call.1} parent=5 // pred_check
        %p117 = pneg %p116
      $region18: #{tpu_custom_call.1} parent=5 // pred_check_branch
        %119 = sbr.rel (%p117) target = $region20
      $region19: #{tpu_custom_call.1} parent=5 // pred_region
        // Predicated region
        $region21: #{tpu_custom_call.1} parent=19 // pred_check
          %p120 = pneg %p35
        $region22: #{tpu_custom_call.1} parent=19 // pred_check_branch
          %122 = sbr.rel (%p120) target = $region24
        $region23: #{tpu_custom_call.1} parent=19 // pred_region
          %s123 = sand.u32 %s25, 1
          %s124 = scalar_lea.sflag [#allocation3], %s123
          %s125 = sand.u32 %s25, 1
          %s126 = smul.addr %s125, 32
          %s127 = scalar_lea.vmem [#allocation2], %s126
          %s128 = smul.u32 2, %s15
          %s130 = ssub.s32 512, 512
          %131 = vsyncadd %s124, %s130
          %s132 = smul.addr %s128, 128
          %s133 = scalar_lea.hbm %s0, %s132
          %s134 = sshll.u32 %s127, 4
          %s135 = int_to_ptr.vmem [resolvable:$true] %s134
          %140 = dma.hbm_to_vmem [thread:$0]  %s133, 512, %s135, %s124, 512, 256, 16
        $region24: #{tpu_custom_call.1} parent=19 // pred_fallthru
          _
      $region20: #{tpu_custom_call.1} parent=5 // pred_fallthru
        _
      %p141 = scmp.le.s32.totalorder 1, %s15
      %p142 = scmp.lt.s32.totalorder %s15, 3
      %p143 = pnand %p141, %p142
      %p144 = pneg %p143
      // Predicated region
      $region25: #{tpu_custom_call.1} parent=5 // pred_check
        _
      $region26: #{tpu_custom_call.1} parent=5 // pred_check_branch
        %146 = sbr.rel (%p143) target = $region28
      $region27: #{tpu_custom_call.1} parent=5 // pred_region
        %s147 = ssub.s32 %s15, 1
        %s148 = sand.u32 %s28, 1
        %s149 = scalar_lea.sflag [#allocation3], %s148
        %s150 = sand.u32 %s28, 1
        %s151 = smul.addr %s150, 32
        %s152 = scalar_lea.vmem [#allocation2], %s151
        // Predicated region
        $region29: #{tpu_custom_call.1} parent=27 // pred_check
          %p153 = pneg %p41
        $region30: #{tpu_custom_call.1} parent=27 // pred_check_branch
          %155 = sbr.rel (%p153) target = $region32
        $region31: #{tpu_custom_call.1} parent=27 // pred_region
          %156 = dma.done %s149, 512
        $region32: #{tpu_custom_call.1} parent=27 // pred_fallthru
          _
        // Predicated region
        $region33: #{tpu_custom_call.1} parent=27 // pred_check
          %p157 = pneg %p62
        $region34: #{tpu_custom_call.1} parent=27 // pred_check_branch
          %159 = sbr.rel (%p157) target = $region36
        $region35: #{tpu_custom_call.1} parent=27 // pred_region
          %160 = dma.done [#allocation6], 512
        $region36: #{tpu_custom_call.1} parent=27 // pred_fallthru
          _
        %s161 = sand.u32 %s28, 1
        %s162 = scalar_lea.sflag [#allocation3], %s161
        %s163 = sand.u32 %s28, 1
        %s164 = smul.addr %s163, 32
        %s165 = scalar_lea.vmem [#allocation2], %s164
        %p166 = pneg %p41
        %p167 = pneg %p38
        %p168 = pneg %p62
        %p169 = pneg %p59
        %p170 = pneg %p88
        %p171 = pneg %p85
        %s172 = sand.u32 %s75, 1
        %s173 = scalar_lea.sflag [#allocation4], %s172
        %s174 = sand.u32 %s75, 1
        %s175 = smul.addr %s174, 32
        %s176 = scalar_lea.vmem [#allocation7], %s175
        %s177 = smul.u32 2, %s20
        %s178 = smul.u32 2, %s20
        %v179 = vld [vmem:[%s152] sm:$0xff]
        %v180 = vld [vmem:[%s152 + $0x8] sm:$0xff]
        %v181 = vld [vmem:[%s152 + $0x10] sm:$0xff]
        %v182 = vld [vmem:[%s152 + $0x18] sm:$0xff]
        %v185 = vrot.slane %v179, 1
        %v186 = vrot.slane %v180, 1
        %v189 = vsub.f32 %v179, %v185
        %v190 = vsub.f32 %v180, %v186
        %v191 = vand.u32 2147483647, %v189
        %v192 = vand.u32 2147483647, %v190
        %v193 = vmul.f32 %v191, 0.1
        %v194 = vmul.f32 %v192, 0.1
        %v197 = vrot.slane %v193, 3
        %v198 = vrot.slane %v194, 3
        %v201 = vsub.f32 %v179, %v197
        %v202 = vsub.f32 %v180, %v198
        %v203 = vmul.f32 %v181, 0.05
        %v204 = vmul.f32 %v182, 0.05
        %v207 = vrot.slane %v203, 4
        %v208 = vrot.slane %v204, 4
        %v211 = vadd.f32 %v201, %v207
        %v212 = vadd.f32 %v202, %v208
        %v213 = vmax.f32 %v211, 0.0
        %v214 = vmax.f32 %v212, 0.0
        %v215 = vmin.f32 %v213, 1.0
        %v216 = vmin.f32 %v214, 1.0
        %v217 = vmul.f32 %v215, 0.5
        %v218 = vmul.f32 %v216, 0.5
        %v219 = vadd.f32 %v217, 1.0
        %v220 = vadd.f32 %v218, 1.0
        %v223 = vrot.slane %v219, 7
        %v224 = vrot.slane %v220, 7
        %v227 = vmul.f32 %v179, %v223
        %v228 = vmul.f32 %v180, %v224
        %v229 = vmul.f32 %v191, %v181
        %v230 = vmul.f32 %v192, %v182
        %v231 = vsub.f32 1.0, %v229
        %v232 = vsub.f32 1.0, %v230
        %v233 = vmax.f32 %v231, 0.1
        %v234 = vmax.f32 %v232, 0.1
        %v235 = vmin.f32 %v233, 1.0
        %v236 = vmin.f32 %v234, 1.0
        %v237 = vlaneseq
        %v238 = vshrl.u32 %v237, 7
        %v239 = vadd.s32 %v238, 8
        %vm240 = vcmp.eq.s32.totalorder %v238, 1
        %vm241 = vcmp.eq.s32.totalorder %v239, 1
        %v242 = vlaneseq
        %v243 = vshrl.u32 %v242, 7
        %v244 = vsub.s32 0, %v243
        %v245 = vrot.slane %v235, %v244
        %v246 = vlaneseq
        %v247 = vshrl.u32 %v246, 7
        %v248 = vsub.s32 0, %v247
        %v249 = vrot.slane %v236, %v248
        %v250 = vsel %vm240, %v245, 1.0
        %v251 = vsel %vm240, %v249, 1.0
        %v252 = vsel %vm241, %v245, 1.0
        %v253 = vsel %vm241, %v249, 1.0
        %vm254 = vcmp.ge.s32.totalorder %v238, 5
        %vm255 = vcmp.ge.s32.totalorder %v239, 5
        %vm256 = vcmp.lt.s32.totalorder %v238, 15
        %vm257 = vcmp.lt.s32.totalorder %v239, 15
        %vm258 = vmand %vm254, %vm256
        %vm259 = vmand %vm255, %vm257
        %v260 = vsel %vm258, 0.0, %v250
        %v261 = vsel %vm258, 0.0, %v251
        %v262 = vsel %vm259, 0.0, %v252
        %v263 = vsel %vm259, 0.0, %v253
        %v264 = vmul.f32 %v179, %v260
        %v265 = vmul.f32 %v180, %v261
        %v266 = vmul.f32 %v181, %v262
        %v267 = vmul.f32 %v182, %v263
        %v268 = vld [vmem:[#allocation5] sm:$0xff]
        %v269 = vld [vmem:[#allocation5 + $0x8] sm:$0xff]
        %v270 = vld [vmem:[#allocation5 + $0x10] sm:$0xff]
        %v271 = vld [vmem:[#allocation5 + $0x18] sm:$0xff]
        %v272 = vld [vmem:[#allocation5] sm:$0xff]
        %v273 = vld [vmem:[#allocation5 + $0x8] sm:$0xff]
        %v274 = vadd.s32 %v238, 16
        %v275 = vadd.s32 %v238, 24
        %vm276 = vcmp.lt.s32.totalorder %v238, 12
        %vm277 = vcmp.lt.s32.totalorder %v239, 12
        %vm278 = vcmp.lt.s32.totalorder %v274, 12
        %vm279 = vcmp.lt.s32.totalorder %v275, 12
        %vm280 = vcmask 130048
        %v282 = vsel %vm280, %v268, 0
        %v285 = vsel %vm280, %v269, 0
        %v288 = vsel %vm280, %v270, 0
        %v291 = vsel %vm280, %v271, 0
        %293 = vmatprep.subr.mxu0 0.0
        %294 = vmatpush1.msra.mxu0 0.0
        %295 = vmatprep.subr.mxu0 0.0
        %296 = vmatpush1.msra.mxu0 0.0
        %297 = vmatprep.subr.mxu0 0.0
        %298 = vmatpush1.msra.mxu0 0.0
        %299 = vmatprep.subr.mxu0 0.0
        %300 = vmatpush1.msra.mxu0 0.0
        %301 = vmatprep.subr.mxu0 0.0
        %302 = vmatpush1.msra.mxu0 0.0
        %303 = vmatprep.subr.mxu0 0.0
        %304 = vmatpush1.msra.mxu0 0.0
        %305 = vmatprep.subr.mxu0 0.0
        %306 = vmatpush1.msra.mxu0 0.0
        %307 = vmatprep.subr.mxu0 0.0
        %308 = vmatpush1.msra.mxu0 0.0
        %309 = vmatprep.subr.mxu0 0.0
        %310 = vmatpush1.msra.mxu0 0.0
        %311 = vmatprep.subr.mxu0 0.0
        %312 = vmatpush1.msra.mxu0 0.0
        %313 = vmatprep.subr.mxu0 0.0
        %314 = vmatpush1.msra.mxu0 0.0
        %315 = vmatprep.subr.mxu0 0.0
        %316 = vmatpush1.msra.mxu0 0.0
        %317 = vmatprep.subr.mxu0 0.0
        %318 = vmatpush1.msra.mxu0 0.0
        %319 = vmatprep.subr.mxu0 0.0
        %320 = vmatpush1.msra.mxu0 0.0
        %321 = vmatprep.subr.mxu0 %v267
        %322 = vmatpush1.msra.mxu0 %v266
        %323 = vmatprep.subr.mxu0 %v265
        %324 = vmatpush1.msra.mxu0 %v264
        %325 = vmatprep.subr.mxu0 0.0
        %326 = vmatpush2.msra.mxu0 0.0
        %327 = vmatprep.subr.mxu0 0.0
        %328 = vmatpush2.msra.mxu0 0.0
        %329 = vmatprep.subr.mxu0 0.0
        %330 = vmatpush2.msra.mxu0 0.0
        %331 = vmatprep.subr.mxu0 0.0
        %332 = vmatpush2.msra.mxu0 0.0
        %333 = vmatprep.subr.mxu0 0.0
        %334 = vmatpush2.msra.mxu0 0.0
        %335 = vmatprep.subr.mxu0 0.0
        %336 = vmatpush2.msra.mxu0 0.0
        %337 = vmatprep.subr.mxu0 0.0
        %338 = vmatpush2.msra.mxu0 0.0
        %339 = vmatprep.subr.mxu0 0.0
        %340 = vmatpush2.msra.mxu0 0.0
        %341 = vmatprep.subr.mxu0 0.0
        %342 = vmatpush2.msra.mxu0 0.0
        %343 = vmatprep.subr.mxu0 0.0
        %344 = vmatpush2.msra.mxu0 0.0
        %345 = vmatprep.subr.mxu0 0.0
        %346 = vmatpush2.msra.mxu0 0.0
        %347 = vmatprep.subr.mxu0 0.0
        %348 = vmatpush2.msra.mxu0 0.0
        %349 = vmatprep.subr.mxu0 0.0
        %350 = vmatpush2.msra.mxu0 0.0
        %351 = vmatprep.subr.mxu0 0.0
        %352 = vmatpush2.msra.mxu0 0.0
        %353 = vmatprep.subr.mxu0 0.0
        %354 = vmatpush2.msra.mxu0 0.0
        %355 = vmatprep.subr.mxu0 0.0
        %356 = vmatpush2.msra.mxu0 0.0
        %357 = vmatprep.mubr.f32.mxu0 0.0
        %358 = vmatmul.mubr.f32.gmra.mxu0 %v282
        %v359 = vpop.f32.mrf.mxu0
        %v360 = vadd.f32 0.0, %v359
        %v361 = vpop.f32.mrf.mxu0
        %v362 = vadd.f32 0.0, %v361
        %363 = vmatprep.mubr.f32.mxu0 0.0
        %364 = vmatmul.mubr.f32.gmra.mxu0 %v285
        %v365 = vpop.f32.mrf.mxu0
        %v366 = vadd.f32 0.0, %v365
        %v367 = vpop.f32.mrf.mxu0
        %v368 = vadd.f32 0.0, %v367
        %369 = vmatprep.mubr.f32.mxu0 0.0
        %370 = vmatmul.mubr.f32.gmra.mxu0 %v288
        %v371 = vpop.f32.mrf.mxu0
        %v372 = vadd.f32 0.0, %v371
        %v373 = vpop.f32.mrf.mxu0
        %v374 = vadd.f32 0.0, %v373
        %375 = vmatprep.mubr.f32.mxu0 0.0
        %376 = vmatmul.mubr.f32.gmra.mxu0 %v291
        %v377 = vpop.f32.mrf.mxu0
        %v378 = vadd.f32 0.0, %v377
        %v379 = vpop.f32.mrf.mxu0
        %v380 = vadd.f32 0.0, %v379
        %381 = vdwg.mxu0
        %v382 = vmax.f32 %v360, 0.0
        %v383 = vmax.f32 %v362, 0.0
        %v384 = vmax.f32 %v366, 0.0
        %v385 = vmax.f32 %v368, 0.0
        %v386 = vmax.f32 %v372, 0.0
        %v387 = vmax.f32 %v374, 0.0
        %v388 = vmax.f32 %v378, 0.0
        %v389 = vmax.f32 %v380, 0.0
        %v390 = vsel %vm276, %v382, %v360
        %v391 = vsel %vm276, %v383, %v362
        %v392 = vsel %vm277, %v384, %v366
        %v393 = vsel %vm277, %v385, %v368
        %v394 = vsel %vm278, %v386, %v372
        %v395 = vsel %vm278, %v387, %v374
        %v396 = vsel %vm279, %v388, %v378
        %v397 = vsel %vm279, %v389, %v380
        %398 = vrot.lane.b32.xlu0 %v268, 112
        %v399 = vpop.permute.xlu0 %398
        %400 = vrot.lane.b32.xlu0 %v269, 112
        %v401 = vpop.permute.xlu0 %400
        %402 = vrot.lane.b32.xlu0 %v270, 112
        %v403 = vpop.permute.xlu0 %402
        %404 = vrot.lane.b32.xlu0 %v271, 112
        %v405 = vpop.permute.xlu0 %404
        %vm406 = vcmask 261120
        %v407 = vsel %vm406, %v399, 0
        %v409 = vsel %vm406, %v401, 0
        %v411 = vsel %vm406, %v403, 0
        %v413 = vsel %vm406, %v405, 0
        %415 = vmatprep.subr.mxu0 0.0
        %416 = vmatpush1.msra.mxu0 0.0
        %417 = vmatprep.subr.mxu0 0.0
        %418 = vmatpush1.msra.mxu0 0.0
        %419 = vmatprep.subr.mxu0 0.0
        %420 = vmatpush1.msra.mxu0 0.0
        %421 = vmatprep.subr.mxu0 0.0
        %422 = vmatpush1.msra.mxu0 0.0
        %423 = vmatprep.subr.mxu0 0.0
        %424 = vmatpush1.msra.mxu0 0.0
        %425 = vmatprep.subr.mxu0 0.0
        %426 = vmatpush1.msra.mxu0 0.0
        %427 = vmatprep.subr.mxu0 0.0
        %428 = vmatpush1.msra.mxu0 0.0
        %429 = vmatprep.subr.mxu0 0.0
        %430 = vmatpush1.msra.mxu0 0.0
        %431 = vmatprep.subr.mxu0 0.0
        %432 = vmatpush1.msra.mxu0 0.0
        %433 = vmatprep.subr.mxu0 0.0
        %434 = vmatpush1.msra.mxu0 0.0
        %435 = vmatprep.subr.mxu0 0.0
        %436 = vmatpush1.msra.mxu0 0.0
        %437 = vmatprep.subr.mxu0 0.0
        %438 = vmatpush1.msra.mxu0 0.0
        %439 = vmatprep.subr.mxu0 %v397
        %440 = vmatpush1.msra.mxu0 %v396
        %441 = vmatprep.subr.mxu0 %v395
        %442 = vmatpush1.msra.mxu0 %v394
        %443 = vmatprep.subr.mxu0 %v393
        %444 = vmatpush1.msra.mxu0 %v392
        %445 = vmatprep.subr.mxu0 %v391
        %446 = vmatpush1.msra.mxu0 %v390
        %447 = vmatprep.subr.mxu0 0.0
        %448 = vmatpush2.msra.mxu0 0.0
        %449 = vmatprep.subr.mxu0 0.0
        %450 = vmatpush2.msra.mxu0 0.0
        %451 = vmatprep.subr.mxu0 0.0
        %452 = vmatpush2.msra.mxu0 0.0
        %453 = vmatprep.subr.mxu0 0.0
        %454 = vmatpush2.msra.mxu0 0.0
        %455 = vmatprep.subr.mxu0 0.0
        %456 = vmatpush2.msra.mxu0 0.0
        %457 = vmatprep.subr.mxu0 0.0
        %458 = vmatpush2.msra.mxu0 0.0
        %459 = vmatprep.subr.mxu0 0.0
        %460 = vmatpush2.msra.mxu0 0.0
        %461 = vmatprep.subr.mxu0 0.0
        %462 = vmatpush2.msra.mxu0 0.0
        %463 = vmatprep.subr.mxu0 0.0
        %464 = vmatpush2.msra.mxu0 0.0
        %465 = vmatprep.subr.mxu0 0.0
        %466 = vmatpush2.msra.mxu0 0.0
        %467 = vmatprep.subr.mxu0 0.0
        %468 = vmatpush2.msra.mxu0 0.0
        %469 = vmatprep.subr.mxu0 0.0
        %470 = vmatpush2.msra.mxu0 0.0
        %471 = vmatprep.subr.mxu0 0.0
        %472 = vmatpush2.msra.mxu0 0.0
        %473 = vmatprep.subr.mxu0 0.0
        %474 = vmatpush2.msra.mxu0 0.0
        %475 = vmatprep.subr.mxu0 0.0
        %476 = vmatpush2.msra.mxu0 0.0
        %477 = vmatprep.subr.mxu0 0.0
        %478 = vmatpush2.msra.mxu0 0.0
        %479 = vmatprep.mubr.f32.mxu0 0.0
        %480 = vmatmul.mubr.f32.gmra.mxu0 %v407
        %v481 = vpop.f32.mrf.mxu0
        %v482 = vadd.f32 0.0, %v481
        %v483 = vpop.f32.mrf.mxu0
        %v484 = vadd.f32 0.0, %v483
        %485 = vmatprep.mubr.f32.mxu0 0.0
        %486 = vmatmul.mubr.f32.gmra.mxu0 %v409
        %v487 = vpop.f32.mrf.mxu0
        %v488 = vadd.f32 0.0, %v487
        %v489 = vpop.f32.mrf.mxu0
        %v490 = vadd.f32 0.0, %v489
        %491 = vmatprep.mubr.f32.mxu0 0.0
        %492 = vmatmul.mubr.f32.gmra.mxu0 %v411
        %v493 = vpop.f32.mrf.mxu0
        %v494 = vadd.f32 0.0, %v493
        %v495 = vpop.f32.mrf.mxu0
        %v496 = vadd.f32 0.0, %v495
        %497 = vmatprep.mubr.f32.mxu0 0.0
        %498 = vmatmul.mubr.f32.gmra.mxu0 %v413
        %v499 = vpop.f32.mrf.mxu0
        %v500 = vadd.f32 0.0, %v499
        %v501 = vpop.f32.mrf.mxu0
        %v502 = vadd.f32 0.0, %v501
        %503 = vdwg.mxu0
        %v504 = vmax.f32 %v482, 0.0
        %v505 = vmax.f32 %v484, 0.0
        %v506 = vmax.f32 %v488, 0.0
        %v507 = vmax.f32 %v490, 0.0
        %v508 = vmax.f32 %v494, 0.0
        %v509 = vmax.f32 %v496, 0.0
        %v510 = vmax.f32 %v500, 0.0
        %v511 = vmax.f32 %v502, 0.0
        %v512 = vsel %vm276, %v504, %v482
        %v513 = vsel %vm276, %v505, %v484
        %v514 = vsel %vm277, %v506, %v488
        %v515 = vsel %vm277, %v507, %v490
        %v516 = vsel %vm278, %v508, %v494
        %v517 = vsel %vm278, %v509, %v496
        %v518 = vsel %vm279, %v510, %v500
        %v519 = vsel %vm279, %v511, %v502
        %522 = vrot.lane.b32.xlu0 %v272, 80
        %v523 = vpop.permute.xlu0 %522
        %524 = vrot.lane.b32.xlu0 %v273, 80
        %v525 = vpop.permute.xlu0 %524
        %v526 = vsel %vm406, %v523, 0
        %v528 = vsel %vm406, %v525, 0
        %530 = vmatprep.subr.mxu0 0.0
        %531 = vmatpush1.msra.mxu0 0.0
        %532 = vmatprep.subr.mxu0 0.0
        %533 = vmatpush1.msra.mxu0 0.0
        %534 = vmatprep.subr.mxu0 0.0
        %535 = vmatpush1.msra.mxu0 0.0
        %536 = vmatprep.subr.mxu0 0.0
        %537 = vmatpush1.msra.mxu0 0.0
        %538 = vmatprep.subr.mxu0 0.0
        %539 = vmatpush1.msra.mxu0 0.0
        %540 = vmatprep.subr.mxu0 0.0
        %541 = vmatpush1.msra.mxu0 0.0
        %542 = vmatprep.subr.mxu0 0.0
        %543 = vmatpush1.msra.mxu0 0.0
        %544 = vmatprep.subr.mxu0 0.0
        %545 = vmatpush1.msra.mxu0 0.0
        %546 = vmatprep.subr.mxu0 0.0
        %547 = vmatpush1.msra.mxu0 0.0
        %548 = vmatprep.subr.mxu0 0.0
        %549 = vmatpush1.msra.mxu0 0.0
        %550 = vmatprep.subr.mxu0 0.0
        %551 = vmatpush1.msra.mxu0 0.0
        %552 = vmatprep.subr.mxu0 0.0
        %553 = vmatpush1.msra.mxu0 0.0
        %554 = vmatprep.subr.mxu0 %v519
        %555 = vmatpush1.msra.mxu0 %v518
        %556 = vmatprep.subr.mxu0 %v517
        %557 = vmatpush1.msra.mxu0 %v516
        %558 = vmatprep.subr.mxu0 %v515
        %559 = vmatpush1.msra.mxu0 %v514
        %560 = vmatprep.subr.mxu0 %v513
        %561 = vmatpush1.msra.mxu0 %v512
        %562 = vmatprep.subr.mxu0 0.0
        %563 = vmatpush2.msra.mxu0 0.0
        %564 = vmatprep.subr.mxu0 0.0
        %565 = vmatpush2.msra.mxu0 0.0
        %566 = vmatprep.subr.mxu0 0.0
        %567 = vmatpush2.msra.mxu0 0.0
        %568 = vmatprep.subr.mxu0 0.0
        %569 = vmatpush2.msra.mxu0 0.0
        %570 = vmatprep.subr.mxu0 0.0
        %571 = vmatpush2.msra.mxu0 0.0
        %572 = vmatprep.subr.mxu0 0.0
        %573 = vmatpush2.msra.mxu0 0.0
        %574 = vmatprep.subr.mxu0 0.0
        %575 = vmatpush2.msra.mxu0 0.0
        %576 = vmatprep.subr.mxu0 0.0
        %577 = vmatpush2.msra.mxu0 0.0
        %578 = vmatprep.subr.mxu0 0.0
        %579 = vmatpush2.msra.mxu0 0.0
        %580 = vmatprep.subr.mxu0 0.0
        %581 = vmatpush2.msra.mxu0 0.0
        %582 = vmatprep.subr.mxu0 0.0
        %583 = vmatpush2.msra.mxu0 0.0
        %584 = vmatprep.subr.mxu0 0.0
        %585 = vmatpush2.msra.mxu0 0.0
        %586 = vmatprep.subr.mxu0 0.0
        %587 = vmatpush2.msra.mxu0 0.0
        %588 = vmatprep.subr.mxu0 0.0
        %589 = vmatpush2.msra.mxu0 0.0
        %590 = vmatprep.subr.mxu0 0.0
        %591 = vmatpush2.msra.mxu0 0.0
        %592 = vmatprep.subr.mxu0 0.0
        %593 = vmatpush2.msra.mxu0 0.0
        %594 = vmatprep.mubr.f32.mxu0 0.0
        %595 = vmatmul.mubr.f32.gmra.mxu0 %v526
        %v596 = vpop.f32.mrf.mxu0
        %v597 = vadd.f32 0.0, %v596
        %v598 = vpop.f32.mrf.mxu0
        %v599 = vadd.f32 0.0, %v598
        %600 = vmatprep.mubr.f32.mxu0 0.0
        %601 = vmatmul.mubr.f32.gmra.mxu0 %v528
        %v602 = vpop.f32.mrf.mxu0
        %v603 = vadd.f32 0.0, %v602
        %v604 = vpop.f32.mrf.mxu0
        %v605 = vadd.f32 0.0, %v604
        %606 = vdwg.mxu0
        %v607 = vtanh.pop %v597
        %v608 = vtanh.pop %v599
        %v609 = vsub.f32 1.0, %v181
        %v610 = vsub.f32 1.0, %v182
        %v611 = vsub.f32 %v607, %v179
        %v612 = vsub.f32 %v608, %v180
        %v615 = vrot.slane %v611, 6
        %v616 = vrot.slane %v612, 6
        %v619 = vmul.f32 %v609, %v615
        %v620 = vmul.f32 %v610, %v616
        %v623 = vrot.slane %v227, 4
        %v624 = vrot.slane %v228, 4
        %v627 = vmul.f32 %v619, %v623
        %v628 = vmul.f32 %v620, %v624
        %v629 = vsub.f32 1.0, %v179
        %v630 = vsub.f32 1.0, %v180
        %v633 = vrot.slane %v629, 5
        %v634 = vrot.slane %v630, 5
        %v637 = vmul.f32 %v627, %v633
        %v638 = vmul.f32 %v628, %v634
        %v641 = vrot.slane %v637, 2
        %v642 = vrot.slane %v638, 2
        %v645 = vadd.f32 %v179, %v641
        %v646 = vadd.f32 %v180, %v642
        %vm647 = vcmp.ge.s32.totalorder %v238, 4
        %vm648 = vcmp.ge.s32.totalorder %v239, 4
        %v649 = vsel %vm647, %v597, 0.0
        %v650 = vsel %vm647, %v599, 0.0
        %v651 = vsel %vm648, %v603, 0.0
        %v652 = vsel %vm648, %v605, 0.0
        %vm653 = vcmp.eq.s32.totalorder %v238, 0
        %vm654 = vcmp.eq.s32.totalorder %v239, 0
        %v655 = vlaneseq
        %v656 = vshrl.u32 %v655, 7
        %v657 = vsub.s32 0, %v656
        %v658 = vrot.slane %v607, %v657
        %v659 = vlaneseq
        %v660 = vshrl.u32 %v659, 7
        %v661 = vsub.s32 0, %v660
        %v662 = vrot.slane %v608, %v661
        %v663 = vsel %vm653, %v658, %v649
        %v664 = vsel %vm653, %v662, %v650
        %v665 = vsel %vm654, %v658, %v651
        %v666 = vsel %vm654, %v662, %v652
        %v667 = vlaneseq
        %v668 = vshrl.u32 %v667, 7
        %v669 = vsub.s32 0, %v668
        %v670 = vrot.slane %v645, %v669
        %v671 = vlaneseq
        %v672 = vshrl.u32 %v671, 7
        %v673 = vsub.s32 0, %v672
        %v674 = vrot.slane %v646, %v673
        %v675 = vsel %vm240, %v670, %v663
        %v676 = vsel %vm240, %v674, %v664
        %v677 = vsel %vm241, %v670, %v665
        %v678 = vsel %vm241, %v674, %v666
        %vm679 = vcmp.eq.s32.totalorder %v238, 2
        %vm680 = vcmp.eq.s32.totalorder %v239, 2
        %v681 = vlaneseq
        %v682 = vshrl.u32 %v681, 7
        %v683 = vsub.s32 5, %v682
        %v684 = vrot.slane %v215, %v683
        %v685 = vlaneseq
        %v686 = vshrl.u32 %v685, 7
        %v687 = vsub.s32 5, %v686
        %v688 = vrot.slane %v216, %v687
        %v689 = vsel %vm679, %v684, %v675
        %v690 = vsel %vm679, %v688, %v676
        %v691 = vsel %vm680, %v684, %v677
        %v692 = vsel %vm680, %v688, %v678
        %693 = vst [vmem:[%s176] sm:$0xff] %v689
        %694 = vst [vmem:[%s176 + $0x8] sm:$0xff] %v690
        %695 = vst [vmem:[%s176 + $0x10] sm:$0xff] %v691
        %696 = vst [vmem:[%s176 + $0x18] sm:$0xff] %v692
        %s697 = sand.u32 %s75, 1
        %s698 = scalar_lea.sflag [#allocation4], %s697
        %s699 = sand.u32 %s75, 1
        %s700 = smul.addr %s699, 32
        %s701 = scalar_lea.vmem [#allocation7], %s700
        // Predicated region
        $region37: #{tpu_custom_call.1} parent=27 // pred_check
          %p702 = pneg %p85
        $region38: #{tpu_custom_call.1} parent=27 // pred_check_branch
          %704 = sbr.rel (%p702) target = $region40
        $region39: #{tpu_custom_call.1} parent=27 // pred_region
          %s705 = smul.u32 2, %s20
          %s707 = ssub.s32 512, 512
          %708 = vsyncadd %s698, %s707
          %s709 = smul.addr %s705, 128
          %s710 = scalar_lea.hbm %s2, %s709
          %s711 = sshll.u32 %s701, 4
          %s712 = int_to_ptr.vmem [resolvable:$true] %s711
          %717 = dma.vmem_to_hbm [thread:$0]  %s712, 512, %s710, %s698, 256, 512, 16
        $region40: #{tpu_custom_call.1} parent=27 // pred_fallthru
          _
      $region28: #{tpu_custom_call.1} parent=5 // pred_fallthru
        _
      %p718 = scmp.le.s32.totalorder 2, %s15
      // Predicated region
      $region41: #{tpu_custom_call.1} parent=5 // pred_check
        %p719 = pneg %p718
      $region42: #{tpu_custom_call.1} parent=5 // pred_check_branch
        %721 = sbr.rel (%p719) target = $region44
      $region43: #{tpu_custom_call.1} parent=5 // pred_region
        %s722 = ssub.s32 %s15, 2
        // Predicated region
        $region45: #{tpu_custom_call.1} parent=43 // pred_check
          %p723 = pneg %p91
        $region46: #{tpu_custom_call.1} parent=43 // pred_check_branch
          %725 = sbr.rel (%p723) target = $region48
        $region47: #{tpu_custom_call.1} parent=43 // pred_region
          %s726 = sand.u32 %s76, 1
          %s727 = scalar_lea.sflag [#allocation4], %s726
          %s728 = sand.u32 %s76, 1
          %s729 = smul.addr %s728, 32
          %s730 = scalar_lea.vmem [#allocation7], %s729
          %731 = dma.done %s727, 512
        $region48: #{tpu_custom_call.1} parent=43 // pred_fallthru
          _
      $region44: #{tpu_custom_call.1} parent=5 // pred_fallthru
        _
    $region6: #{tpu_custom_call.1} parent=1 // loop_footer
      %s19 = sadd.s32 1, %s15
    $region7: #{tpu_custom_call.1} parent=1 // loop_footer_branch
      %14 = sbr.rel target = $region3
    $region8: #{tpu_custom_call.1} parent=1 // loop_exit
      _
    %732 = vsyncpa [#allocation3], 1
    %s733 = scalar_lea.sflag [#allocation3], 1
    %734 = vsyncpa %s733, 1
    %735 = vsyncpa [#allocation6], 1
    %736 = vsyncpa [#allocation4], 1
    %s737 = scalar_lea.sflag [#allocation4], 1
    %738 = vsyncpa %s737, 1

</llo_original>
